<compile_context>
chip_gen: v7x
topology: tpu7x:2x2x1
jax: 0.10.0
libtpu: 0.0.40
codegen_flags: <defaults>
</compile_context>

<pallas_src>
import functools

import jax
import jax.numpy as jnp
from jax.experimental import pallas as pl
from jax.experimental.pallas import tpu as pltpu

_LANE_WIDTH = 512        # lane-dense slab width (multiple of 128)
_MAX_BLOCK_ROWS = 512    # (512, 512) f32 tile = 1 MiB
_EPS_U = 1e-6            # clip uniforms away from {0,1} (matches logit(u) being finite)


def _round_up(a, b):
    return (a + b - 1) // b * b


# ---------------------------------------------------------------------------
# Kernels (specialized at trace time on fix_subnet / scores-is-constant).
# ---------------------------------------------------------------------------
def _soft_kernel(x_ref, s_ref, u_ref, o_ref):
    """Stochastic ProbMask with per-element scores.

    With T=1: sigmoid(logit(s) + logit(u)) == s*u / (s*u + (1-s)*(1-u)).
    Single uniform draw, no transcendentals.
    """
    x = x_ref[...].astype(jnp.float32)
    s = s_ref[...].astype(jnp.float32)
    u = jnp.clip(u_ref[...], _EPS_U, 1.0 - _EPS_U)
    su = s * u
    mask = su / (su + (1.0 - s) * (1.0 - u))
    o_ref[...] = (x * mask).astype(o_ref.dtype)


def _soft_const_kernel(x_ref, u_ref, o_ref, *, score_const):
    """Stochastic ProbMask when scores == score_init_constant everywhere
    (first-call init path) — the scores array is never materialized in HBM."""
    c = jnp.float32(score_const)
    x = x_ref[...].astype(jnp.float32)
    u = jnp.clip(u_ref[...], _EPS_U, 1.0 - _EPS_U)
    cu = c * u
    mask = cu / (cu + (1.0 - c) * (1.0 - u))
    o_ref[...] = (x * mask).astype(o_ref.dtype)


def _hard_kernel(x_ref, s_ref, o_ref):
    """Fixed-subnet path: hard threshold of the scores (no PRNG, no EUP)."""
    x = x_ref[...].astype(jnp.float32)
    s = s_ref[...].astype(jnp.float32)
    o_ref[...] = jnp.where(s >= 0.5, x, 0.0).astype(o_ref.dtype)


def _scale_kernel(x_ref, o_ref, *, scale):
    """Fixed-subnet + constant scores: mask is a compile-time constant."""
    o_ref[...] = (x_ref[...].astype(jnp.float32) * jnp.float32(scale)).astype(o_ref.dtype)


# ---------------------------------------------------------------------------
# Wrapper
# ---------------------------------------------------------------------------
def _to_slab(flat, rows_p, width, pad):
    if pad:
        flat = jnp.pad(flat, (0, pad))
    return flat.reshape(rows_p, width)


def _call_elementwise(kernel, out_dtype, arrays, rows_p, block_rows, width):
    grid = (rows_p // block_rows,)
    spec = pl.BlockSpec((block_rows, width), lambda i: (i, 0))
    return pl.pallas_call(
        kernel,
        out_shape=jax.ShapeDtypeStruct((rows_p, width), out_dtype),
        grid=grid,
        in_specs=[spec] * len(arrays),
        out_specs=spec,
        compiler_params=pltpu.CompilerParams(
            # No carried state (uniform noise is an input), so the grid axis is
            # embarrassingly parallel -> megacore sharding on v7x.
            dimension_semantics=("parallel",),
        ),
    )(*arrays)


@functools.partial(
    jax.jit,
    static_argnames=("fix_subnet", "fake_sparse_enabled", "score_init_constant"),
)
def prob_mask_fake_sparse(
    x,
    scores=None,
    *,
    seed=0,
    fix_subnet=False,
    fake_sparse_enabled=True,
    score_init_constant=1.0,
):
    """JAX/Pallas equivalent of ProbMaskFakeSparse.forward.

    scores=None reproduces the module's first-call path where
    scores = ones_like(X) * score_init_constant (constant folded into the kernel).
    """
    if not fake_sparse_enabled:
        return x  # passthrough (fake_sparse_enabled buffer == 0)

    orig_shape = x.shape
    n = x.size
    flat_x = x.reshape(-1)

    # Lane-dense 2D slab: flat -> (rows_p, 512), tiles of (<=512, 512).
    width = _LANE_WIDTH
    rows = max(1, -(-n // width))
    block_rows = _MAX_BLOCK_ROWS if rows >= _MAX_BLOCK_ROWS else _round_up(rows, 8)
    rows_p = _round_up(rows, block_rows)
    pad = rows_p * width - n

    x2 = _to_slab(flat_x, rows_p, width, pad)

    if fix_subnet:
        if scores is None:
            scale = 1.0 if score_init_constant >= 0.5 else 0.0
            kernel = functools.partial(_scale_kernel, scale=scale)
            out2 = _call_elementwise(kernel, x.dtype, (x2,), rows_p, block_rows, width)
        else:
            s2 = _to_slab(scores.reshape(-1), rows_p, width, pad)
            out2 = _call_elementwise(
                _hard_kernel, x.dtype, (x2, s2), rows_p, block_rows, width
            )
    else:
        # TODO(synk): on real TPU the uniform draw could come from the on-chip PRNG
        # (pltpu.prng_random_bits) to save one HBM stream; generated with
        # jax.random here so the kernel also runs under interpret mode (no
        # prng_seed lowering on CPU) and the stream is tiling-independent.
        u2 = jax.random.uniform(
            jax.random.PRNGKey(seed), (rows_p, width), dtype=jnp.float32
        )
        if scores is None:
            kernel = functools.partial(
                _soft_const_kernel, score_const=float(score_init_constant)
            )
            out2 = _call_elementwise(
                kernel, x.dtype, (x2, u2), rows_p, block_rows, width
            )
        else:
            s2 = _to_slab(scores.reshape(-1), rows_p, width, pad)
            out2 = _call_elementwise(
                _soft_kernel, x.dtype, (x2, s2, u2), rows_p, block_rows, width
            )

    out_flat = out2.reshape(-1)
    if pad:
        out_flat = out_flat[:n]
    return out_flat.reshape(orig_shape)


if __name__ == "__main__":
    key = jax.random.PRNGKey(0)
    kx, ks = jax.random.split(key)
    # layout: NCHW, as in the PyTorch module (elementwise op, layout preserved)
    x = jax.random.normal(kx, (2, 4, 16, 16), dtype=jnp.float32)

    # First-call semantics: init_score == 0 -> scores = ones_like(x) * 1.0
    y = jax.block_until_ready(
        prob_mask_fake_sparse(x, seed=0, fix_subnet=False, fake_sparse_enabled=True)
    )
    assert y.shape == x.shape and y.dtype == x.dtype
    # score_init_constant == 1.0 -> soft mask == 1 -> identity
    assert jnp.allclose(y, x, atol=1e-5)

    # Fixed-subnet with constant scores: hard mask == 1 -> identity
    y_fix = jax.block_until_ready(prob_mask_fake_sparse(x, seed=0, fix_subnet=True))
    assert jnp.allclose(y_fix, x)

    # Disabled -> passthrough
    y_off = jax.block_until_ready(prob_mask_fake_sparse(x, fake_sparse_enabled=False))
    assert jnp.allclose(y_off, x)

    # Explicit scores tensor: soft (stochastic) and hard (fixed-subnet) paths
    scores = jax.random.uniform(ks, x.shape, dtype=jnp.float32)
    y_soft = jax.block_until_ready(prob_mask_fake_sparse(x, scores, seed=1))
    assert y_soft.shape == x.shape and y_soft.dtype == x.dtype
    y_hard = jax.block_until_ready(prob_mask_fake_sparse(x, scores, fix_subnet=True))
    assert jnp.allclose(y_hard, jnp.where(scores >= 0.5, x, 0.0))

    print("KERNEL_OK")
</pallas_src>

<mosaic_0001>
module attributes {stable_mosaic.version = 11 : i64} {
  func.func @_soft_const_kernel(%arg0: i32, %arg1: memref<8x512xf32, #tpu.memory_space<vmem>>, %arg2: memref<8x512xf32, #tpu.memory_space<vmem>>, %arg3: memref<8x512xf32, #tpu.memory_space<vmem>>) attributes {dimension_semantics = [#tpu.dimension_semantics<parallel>], iteration_bounds = array<i64: 1>, scalar_prefetch = 0 : i64, scratch_operands = 0 : i64, tpu.core_type = #tpu.core_type<tc>, window_params = [{transform_indices = @transform_0, window_bounds = array<i64: 8, 512>}, {transform_indices = @transform_1, window_bounds = array<i64: 8, 512>}, {transform_indices = @transform_2, window_bounds = array<i64: 8, 512>}]} {
    %c0 = arith.constant 0 : index
    %c0_0 = arith.constant 0 : index
    %0 = vector.load %arg1[%c0, %c0_0] : memref<8x512xf32, #tpu.memory_space<vmem>>, vector<8x512xf32>
    %c0_1 = arith.constant 0 : index
    %c0_2 = arith.constant 0 : index
    %1 = vector.load %arg2[%c0_1, %c0_2] : memref<8x512xf32, #tpu.memory_space<vmem>>, vector<8x512xf32>
    %cst = arith.constant 9.99999997E-7 : f32
    %cst_3 = arith.constant 0.999998986 : f32
    %2 = vector.broadcast %cst : f32 to vector<8x512xf32>
    %3 = arith.maximumf %2, %1 : vector<8x512xf32>
    %4 = vector.broadcast %cst_3 : f32 to vector<8x512xf32>
    %5 = arith.minimumf %4, %3 : vector<8x512xf32>
    %cst_4 = arith.constant 1.000000e+00 : f32
    %6 = vector.broadcast %cst_4 : f32 to vector<8x512xf32>
    %7 = arith.mulf %6, %5 : vector<8x512xf32>
    %cst_5 = arith.constant 1.000000e+00 : f32
    %cst_6 = arith.constant 1.000000e+00 : f32
    %8 = arith.subf %cst_5, %cst_6 : f32
    %cst_7 = arith.constant 1.000000e+00 : f32
    %9 = vector.broadcast %cst_7 : f32 to vector<8x512xf32>
    %10 = arith.subf %9, %5 : vector<8x512xf32>
    %11 = vector.broadcast %8 : f32 to vector<8x512xf32>
    %12 = arith.mulf %11, %10 : vector<8x512xf32>
    %13 = arith.addf %7, %12 : vector<8x512xf32>
    %14 = arith.divf %7, %13 : vector<8x512xf32>
    %15 = arith.mulf %0, %14 : vector<8x512xf32>
    %c0_8 = arith.constant 0 : index
    %c0_9 = arith.constant 0 : index
    %16 = vector.load %arg3[%c0_8, %c0_9] : memref<8x512xf32, #tpu.memory_space<vmem>>, vector<8x512xf32>
    tpu.vector_store %arg3[%c0_8, %c0_9], %15 {strides = array<i32>} : memref<8x512xf32, #tpu.memory_space<vmem>>, vector<8x512xf32>,
    return
  }
  func.func @transform_0(%arg0: i32) -> (i32, i32) {
    %c0_i32 = arith.constant 0 : i32
    %c0_i32_0 = arith.constant 0 : i32
    return %arg0, %c0_i32 : i32, i32
  }
  func.func @transform_1(%arg0: i32) -> (i32, i32) {
    %c0_i32 = arith.constant 0 : i32
    %c0_i32_0 = arith.constant 0 : i32
    return %arg0, %c0_i32 : i32, i32
  }
  func.func @transform_2(%arg0: i32) -> (i32, i32) {
    %c0_i32 = arith.constant 0 : i32
    %c0_i32_0 = arith.constant 0 : i32
    return %arg0, %c0_i32 : i32, i32
  }
}

</mosaic_0001>

<llo_original>
// kernel: prob_mask_fake_sparse.1
$region0: #{prob_mask_fake_sparse.1}
  #allocation0 [shape = 'u32[]', space=smem, size = 0x4, offset = 0x4, fixed_abs, tag = 'smem constant byte address 0x4 - core index']
  #allocation1 [shape = 'u32[144,128]{1,0:T(1,128)}', space=vmem, size = 0x12000, scoped, tag = 'internal scratch']
  %s0 = inlined_call_operand.vmem [shape: f32[8,512], index: 0, kind: input, shape index: {}]
  %s1 = inlined_call_operand.vmem [shape: f32[8,512], index: 1, kind: input, shape index: {}]
  %s2 = inlined_call_operand.vmem [shape: f32[8,512], index: 2, kind: output, shape index: {}]
  %s3 = sld [smem:[#allocation0]]
  $region18: #{prob_mask_fake_sparse.1} parent=0
    _
  %s5 = ssub.s32 1, %s3
  %s6 = scalar_select 0, %s5, %s3
  // Predicated region
  $region2: #{prob_mask_fake_sparse.1} parent=0 // pred_check
    _
  $region3: #{prob_mask_fake_sparse.1} parent=0 // pred_check_branch
    %8 = sbr.rel (0) target = $region5
  $region4: #{prob_mask_fake_sparse.1} parent=0 // pred_region
    _
  $region5: #{prob_mask_fake_sparse.1} parent=0 // pred_fallthru
    _
  // Predicated region
  $region6: #{prob_mask_fake_sparse.1} parent=0 // pred_check
    _
  $region7: #{prob_mask_fake_sparse.1} parent=0 // pred_check_branch
    %10 = sbr.rel (0) target = $region9
  $region8: #{prob_mask_fake_sparse.1} parent=0 // pred_region
    _
  $region9: #{prob_mask_fake_sparse.1} parent=0 // pred_fallthru
    _
  %v11 = vld [vmem:[%s0] sm:$0xff]
  %v12 = vld [vmem:[%s0 + $0x8] sm:$0xff]
  %v13 = vld [vmem:[%s0 + $0x10] sm:$0xff]
  %v14 = vld [vmem:[%s0 + $0x18] sm:$0xff]
  %v15 = vld [vmem:[%s1] sm:$0xff]
  %v16 = vld [vmem:[%s1 + $0x8] sm:$0xff]
  %v17 = vld [vmem:[%s1 + $0x10] sm:$0xff]
  %v18 = vld [vmem:[%s1 + $0x18] sm:$0xff]
  %v19 = vmax.f32 %v15, 1e-06
  %v20 = vmax.f32 %v16, 1e-06
  %v21 = vmax.f32 %v17, 1e-06
  %v22 = vmax.f32 %v18, 1e-06
  %v23 = vmin.f32 %v19, 0.999999
  %v24 = vmin.f32 %v20, 0.999999
  %v25 = vmin.f32 %v21, 0.999999
  %v26 = vmin.f32 %v22, 0.999999
  %v27 = vsub.f32 1.0, %v23
  %v28 = vsub.f32 1.0, %v24
  %v29 = vsub.f32 1.0, %v25
  %v30 = vsub.f32 1.0, %v26
  %v31 = vmul.f32 %v27, 0.0
  %v32 = vmul.f32 %v28, 0.0
  %v33 = vmul.f32 %v29, 0.0
  %v34 = vmul.f32 %v30, 0.0
  %v35 = vadd.f32 %v23, %v31
  %v36 = vadd.f32 %v24, %v32
  %v37 = vadd.f32 %v25, %v33
  %v38 = vadd.f32 %v26, %v34
  %v39 = vrcp.pop %v35
  %v40 = vmul.f32 %v23, %v39
  %v41 = vrcp.pop %v36
  %v42 = vmul.f32 %v24, %v41
  %v43 = vrcp.pop %v37
  %v44 = vmul.f32 %v25, %v43
  %v45 = vrcp.pop %v38
  %v46 = vmul.f32 %v26, %v45
  %v47 = vmul.f32 %v11, %v40
  %v48 = vmul.f32 %v12, %v42
  %v49 = vmul.f32 %v13, %v44
  %v50 = vmul.f32 %v14, %v46
  %51 = vst [vmem:[%s2] sm:$0xff] %v47
  %52 = vst [vmem:[%s2 + $0x8] sm:$0xff] %v48
  %53 = vst [vmem:[%s2 + $0x10] sm:$0xff] %v49
  %54 = vst [vmem:[%s2 + $0x18] sm:$0xff] %v50
  // Predicated region
  $region10: #{prob_mask_fake_sparse.1} parent=0 // pred_check
    _
  $region11: #{prob_mask_fake_sparse.1} parent=0 // pred_check_branch
    %56 = sbr.rel (0) target = $region13
  $region12: #{prob_mask_fake_sparse.1} parent=0 // pred_region
    _
  $region13: #{prob_mask_fake_sparse.1} parent=0 // pred_fallthru
    _
  // Predicated region
  $region14: #{prob_mask_fake_sparse.1} parent=0 // pred_check
    _
  $region15: #{prob_mask_fake_sparse.1} parent=0 // pred_check_branch
    %58 = sbr.rel (0) target = $region17
  $region16: #{prob_mask_fake_sparse.1} parent=0 // pred_region
    _
  $region17: #{prob_mask_fake_sparse.1} parent=0 // pred_fallthru
    _

</llo_original>
